<compile_context>
chip_gen: v7x
topology: tpu7x:2x2x1
jax: 0.10.0
libtpu: 0.0.40
codegen_flags: <defaults>
</compile_context>

<pallas_src>
import functools

import jax
import jax.numpy as jnp
from jax import lax
from jax.experimental import pallas as pl
from jax.experimental.pallas import tpu as pltpu

TEMPERATURE = 0.07
EPS = 1e-12      # F.normalize default eps
_LANES = 128     # lane-dense output width


def _l2_normalize(x):
    n = jnp.sqrt(jnp.sum(x * x, axis=-1, keepdims=True))
    return x / jnp.maximum(n, EPS)


def _dot_nt(a, b):
    """a @ b.T contracting the feature (last) dim on the MXU, f32 accumulation."""
    a = a.astype(b.dtype)
    dn = (((1,), (1,)), ((), ()))
    return lax.dot_general(a, b, dn, preferred_element_type=jnp.float32)


# ---------------------------------------------------------------------------
# Kernel 1: mask is None branch.
#   Row block of pre-normalized zp / positive zc (tm, N) streamed over a
#   "parallel" grid; ONE fused, pre-normalized column stack
#   cols = [zp ; zc / T] of shape (2B, N) resident as the matmul RHS.
#   Output: per-row loss broadcast into a lane-dense (tm, 128) block; the final
#   scalar mean is done in plain JAX.
# ---------------------------------------------------------------------------
def _nxtent_kernel(zp_row_ref, zc_pos_ref, cols_ref, out_ref, *, b_self, inv_t):
    zp = zp_row_ref[...]            # (tm, N)  f32, already L2-normalized
    zc_pos = zc_pos_ref[...]        # (tm, N)  f32, already L2-normalized
    cols = cols_ref[...]            # (2B, N)  f32 or bf16; zc half pre-scaled 1/T

    zp_mm = zp.astype(cols.dtype)
    logits = _dot_nt(zp_mm, cols)   # (tm, 2B) f32 accumulation
    e_all = jnp.exp(logits)         # single large exp keeps the EUP FIFO fed

    # Self-similarity negatives: row-sum of exp(zp @ zp.T) with the diagonal
    # removed via exp(||zp||^2), computed from the SAME operand dtype as the
    # matmul so the cancellation stays tight. NOT divided by T (matches ref).
    pc_diag = jnp.sum(jnp.square(zp_mm.astype(jnp.float32)), axis=-1, keepdims=True)
    pc_sum = jnp.sum(e_all[:, :b_self], axis=-1, keepdims=True) - jnp.exp(pc_diag)
    cs_sum = jnp.sum(e_all[:, b_self:], axis=-1, keepdims=True)

    # Positive logit computed as an f32 row dot (no diag extraction).
    cs_pos = inv_t * jnp.sum(zp * zc_pos, axis=-1, keepdims=True)    # (tm, 1)

    # l_bp row-sum = log(l_neg) - cs_pos on the single positive entry; the
    # clamp(1.0) nonzero count divides by exactly 1, so per-row loss = value.
    per_row = jnp.log(cs_sum + pc_sum) - cs_pos                      # (tm, 1)
    out_ref[...] = jnp.broadcast_to(per_row, out_ref.shape)


# ---------------------------------------------------------------------------
# Kernel 2: masked branch.
#   Row block of zp (tm, N); k-major row-aligned positives (K, tm, N); mask
#   (tm, K); ONE fused column stack cols = [zp ; zc[:,0]/T ; ... ; zc[:,K-1]/T]
#   of shape ((K+1)*B, N) as the matmul RHS. No (B, B*K) valid mask and no
#   normalized (K,B,N) temporary is ever materialized.
# ---------------------------------------------------------------------------
def _nxtent_masked_kernel(zp_row_ref, zc_pos_ref, mask_ref, cols_ref, out_ref,
                          *, b_self, k_pos, inv_t):
    zp = zp_row_ref[...]                              # (tm, N)
    mask = mask_ref[...].astype(jnp.float32)          # (tm, K)
    cols = cols_ref[...]                              # ((K+1)B, N)

    zp_mm = zp.astype(cols.dtype)
    logits = _dot_nt(zp_mm, cols)                     # (tm, (K+1)B) f32
    e_all = jnp.exp(logits)

    pc_diag = jnp.sum(jnp.square(zp_mm.astype(jnp.float32)), axis=-1, keepdims=True)
    pc_sum = jnp.sum(e_all[:, :b_self], axis=-1, keepdims=True) - jnp.exp(pc_diag)

    # valid_mask depends only on the query row b (not m):
    #   l_cross[b] = sum_k mask[b,k] * sum_m exp(zp[b].zc[m,k]/T)
    # K is small and static -> unrolled per-k lane-slice row-sums.
    l_cross = jnp.zeros_like(pc_sum)                  # (tm, 1)
    pos_cols = []
    for k in range(k_pos):
        lo = b_self * (k + 1)
        cross_k = jnp.sum(e_all[:, lo:lo + b_self], axis=-1, keepdims=True)
        l_cross = l_cross + mask[:, k:k + 1] * cross_k
        # Positive logits: f32 row dots against the k-major row-aligned block.
        pos_cols.append(inv_t * jnp.sum(zp * zc_pos_ref[k], axis=-1, keepdims=True))
    cs_pos = jnp.concatenate(pos_cols, axis=-1)       # (tm, K)

    msum = jnp.sum(mask, axis=-1, keepdims=True)      # (tm, 1)
    l_neg = l_cross + pc_sum * msum                   # (tm, 1)

    # l_bp at positive positions = (log(l_neg) - cs_pos) * mask; count semantics
    # (nonzero entries, clamp(1.0)) preserved verbatim (a masked-in positive with
    # value exactly 0 is dropped from the count, matching the PyTorch quirk).
    vals = (jnp.log(l_neg) - cs_pos) * mask           # (tm, K)
    s = jnp.sum(vals, axis=-1, keepdims=True)
    cnt = jnp.maximum(
        jnp.sum((vals != 0.0).astype(jnp.float32), axis=-1, keepdims=True), 1.0)
    out_ref[...] = jnp.broadcast_to(s / cnt, out_ref.shape)


# ---------------------------------------------------------------------------
# Wrappers
# ---------------------------------------------------------------------------
def _row_tile(b):
    if b <= 8:
        return 8
    if b <= 512:
        # >= 2 grid steps so both v7x TensorCores get work; sublane aligned.
        half = -(-b // 2)
        return min(256, ((half + 7) // 8) * 8)
    return 256


def _pad_rows(x, bp):
    b = x.shape[0]
    if b == bp:
        return x
    pad = [(0, bp - b)] + [(0, 0)] * (x.ndim - 1)
    return jnp.pad(x, pad)


def _vmem_limit_bytes(working_set_bytes):
    # Generation-aware: ~80% of physical VMEM (v5e/v6e 128 MiB, v7x 64 MiB),
    # never below 16 MiB, sized to the tile working set + headroom.
    cap = 64 << 20
    try:
        info = pltpu.get_tpu_info()
        cap = int(getattr(info, "vmem_capacity_bytes", cap))
    except Exception:  # pragma: no cover - query unavailable
        pass
    budget = int(cap * 0.8)
    est = int(working_set_bytes) + (8 << 20)
    return max(16 << 20, min(est, budget))


@functools.partial(jax.jit, static_argnames=("temperature", "bf16_matmul"))
def _cross_modal_nxtent_nomask(z_p, z_c, temperature, bf16_matmul):
    B, N = z_p.shape
    inv_t = 1.0 / float(temperature)

    # Hoisted: normalize once, fold 1/T into the cross columns, single column
    # stack [zp ; zc/T] that the kernel consumes as the matmul RHS.
    zp_n = _l2_normalize(z_p.astype(jnp.float32))          # (B, N)
    zc_n = _l2_normalize(z_c.astype(jnp.float32))          # (B, N)
    mm_dtype = jnp.bfloat16 if bf16_matmul else jnp.float32
    cols = jnp.concatenate([zp_n, zc_n * inv_t], axis=0).astype(mm_dtype)  # (2B, N)

    tm = _row_tile(B)
    Bp = -(-B // tm) * tm
    zp_pad = _pad_rows(zp_n, Bp)
    zc_pad = _pad_rows(zc_n, Bp)
    grid = (Bp // tm,)

    itm = 2 if bf16_matmul else 4
    working = (2 * (4 * tm * N + 4 * tm * N + itm * 2 * B * N)   # double-buffered ins
               + 2 * 4 * tm * _LANES                              # output
               + 2 * 4 * tm * 2 * B)                              # logits + exp temps

    kernel = functools.partial(_nxtent_kernel, b_self=B, inv_t=inv_t)
    out = pl.pallas_call(
        kernel,
        out_shape=jax.ShapeDtypeStruct((Bp, _LANES), jnp.float32),
        grid=grid,
        in_specs=[
            pl.BlockSpec((tm, N), lambda i: (i, 0)),        # zp row block (padded)
            pl.BlockSpec((tm, N), lambda i: (i, 0)),        # zc row block (positives)
            pl.BlockSpec((2 * B, N), lambda i: (0, 0)),     # fused columns [zp ; zc/T]
        ],
        out_specs=pl.BlockSpec((tm, _LANES), lambda i: (i, 0)),
        compiler_params=pltpu.CompilerParams(
            dimension_semantics=("parallel",),
            vmem_limit_bytes=_vmem_limit_bytes(working),
        ),
    )(zp_pad, zc_pad, cols)
    # Lane-dense partial output; final scalar reduction in plain JAX.
    return jnp.mean(out[:B, 0])


@functools.partial(jax.jit, static_argnames=("temperature", "bf16_matmul"))
def _cross_modal_nxtent_masked(z_p, z_c, mask, temperature, bf16_matmul):
    B, N = z_p.shape
    K = z_c.shape[1]
    inv_t = 1.0 / float(temperature)

    zp_n = _l2_normalize(z_p.astype(jnp.float32))          # (B, N)
    zc_n = _l2_normalize(z_c.astype(jnp.float32))          # (B, K, N)
    mm_dtype = jnp.bfloat16 if bf16_matmul else jnp.float32
    # Fused, k-major column stack: [zp ; zc[:,0]/T ; ... ; zc[:,K-1]/T]
    zc_cols = jnp.transpose(zc_n, (1, 0, 2)).reshape(K * B, N) * inv_t
    cols = jnp.concatenate([zp_n, zc_cols], axis=0).astype(mm_dtype)  # ((K+1)B, N)

    tm = _row_tile(B)
    Bp = -(-B // tm) * tm
    zp_pad = _pad_rows(zp_n, Bp)                           # (Bp, N)
    zc_pos = jnp.transpose(_pad_rows(zc_n, Bp), (1, 0, 2))  # (K, Bp, N) k-major
    mask_pad = _pad_rows(mask.astype(jnp.float32), Bp)     # (Bp, K)
    grid = (Bp // tm,)

    itm = 2 if bf16_matmul else 4
    working = (2 * (4 * tm * N + 4 * K * tm * N + 4 * tm * K
                    + itm * (K + 1) * B * N)
               + 2 * 4 * tm * _LANES
               + 2 * 4 * tm * (K + 1) * B)

    kernel = functools.partial(_nxtent_masked_kernel, b_self=B, k_pos=K, inv_t=inv_t)
    out = pl.pallas_call(
        kernel,
        out_shape=jax.ShapeDtypeStruct((Bp, _LANES), jnp.float32),
        grid=grid,
        in_specs=[
            pl.BlockSpec((tm, N), lambda i: (i, 0)),            # zp row block
            pl.BlockSpec((K, tm, N), lambda i: (0, i, 0)),      # positives, k-major
            pl.BlockSpec((tm, K), lambda i: (i, 0)),            # mask row block
            pl.BlockSpec(((K + 1) * B, N), lambda i: (0, 0)),   # fused columns
        ],
        out_specs=pl.BlockSpec((tm, _LANES), lambda i: (i, 0)),
        compiler_params=pltpu.CompilerParams(
            dimension_semantics=("parallel",),
            vmem_limit_bytes=_vmem_limit_bytes(working),
        ),
    )(zp_pad, zc_pos, mask_pad, cols)
    return jnp.mean(out[:B, 0])


def cross_modal_nxtent(z_p, z_c, mask=None, temperature=TEMPERATURE,
                       bf16_matmul=True):
    """bf16_matmul=True (default): bf16 MXU operands, f32 accumulation/exp/log.
    Set bf16_matmul=False for bit-accurate-ish f32 MXU operands."""
    if mask is None:
        return _cross_modal_nxtent_nomask(
            z_p, z_c, temperature=temperature, bf16_matmul=bf16_matmul)
    return _cross_modal_nxtent_masked(
        z_p, z_c, mask, temperature=temperature, bf16_matmul=bf16_matmul)


# ---------------------------------------------------------------------------
# Pure-JAX references (mirror the PyTorch forward) for verification.
# ---------------------------------------------------------------------------
def _ref_nomask(zp, zc, temperature):
    zp = _l2_normalize(zp)
    zc = _l2_normalize(zc)
    B = zp.shape[0]
    eye = jnp.eye(B, dtype=jnp.float32)
    negm = 1.0 - eye
    exp_pc = jnp.exp(zp @ zp.T) * negm
    exp_sim = jnp.exp(zp @ zc.T / temperature)
    l_neg = jnp.sum(exp_sim + exp_pc, axis=1, keepdims=True)
    l_bp = -jnp.log(exp_sim / l_neg) * eye
    s = jnp.sum(l_bp, axis=1, keepdims=True)
    c = jnp.maximum(jnp.sum(l_bp != 0, axis=1, keepdims=True).astype(jnp.float32), 1.0)
    return jnp.mean(s / c)


def _ref_masked(zp, zc, mask, temperature):
    zp = _l2_normalize(zp)
    zc = _l2_normalize(zc)
    B, K, _ = zc.shape
    eye = jnp.eye(B, dtype=jnp.float32)
    negm = 1.0 - eye
    exp_pc = jnp.exp(zp @ zp.T) * negm
    c_sim = jnp.einsum("bn,mkn->bmk", zp, zc) / temperature
    exp_sim = jnp.exp(c_sim)
    valid = jnp.broadcast_to(mask[:, None, :], (B, B, K)).astype(jnp.float32)
    pos3 = jnp.broadcast_to(eye[:, :, None], (B, B, K))
    exp_pc3 = jnp.broadcast_to(exp_pc[:, :, None], (B, B, K))
    neg_sim = exp_sim * valid + exp_pc3 * valid
    l_neg = neg_sim.sum(axis=(1, 2))
    l_bp = -jnp.log(exp_sim / l_neg[:, None, None]) * pos3 * valid
    s = l_bp.sum(axis=(1, 2))
    c = jnp.maximum((l_bp != 0).sum(axis=(1, 2)).astype(jnp.float32), 1.0)
    return jnp.mean(s / c)


if __name__ == "__main__":
    B, K, N = 8, 4, 32
    key = jax.random.PRNGKey(0)
    k1, k2, k3, k4 = jax.random.split(key, 4)

    # no-mask branch inputs: z_p (B, N), z_c (B, N)
    z_p = jax.random.normal(k1, (B, N), dtype=jnp.float32)
    z_c2d = jax.random.normal(k2, (B, N), dtype=jnp.float32)

    # masked branch inputs: z_c (B, K, N), mask (B, K) with >=1 valid token per row
    z_c3d = jax.random.normal(k3, (B, K, N), dtype=jnp.float32)
    mask = (jax.random.uniform(k4, (B, K)) > 0.4).astype(jnp.float32)
    mask = mask.at[:, 0].set(1.0)

    ref_nomask = jax.block_until_ready(_ref_nomask(z_p, z_c2d, TEMPERATURE))
    ref_masked = jax.block_until_ready(_ref_masked(z_p, z_c3d, mask, TEMPERATURE))

    # Strict check: f32 MXU operands against the f32 reference at 1e-4.
    loss_nomask_f32 = jax.block_until_ready(
        cross_modal_nxtent(z_p, z_c2d, bf16_matmul=False))
    loss_masked_f32 = jax.block_until_ready(
        cross_modal_nxtent(z_p, z_c3d, mask, bf16_matmul=False))
    assert jnp.allclose(loss_nomask_f32, ref_nomask, rtol=1e-4, atol=1e-4), (
        loss_nomask_f32, ref_nomask)
    assert jnp.allclose(loss_masked_f32, ref_masked, rtol=1e-4, atol=1e-4), (
        loss_masked_f32, ref_masked)

    # Default path: bf16 MXU operands (f32 accumulation / exp / log). Logits are
    # perturbed ~1e-3 rel -> check finiteness + relaxed tolerance.
    loss_nomask = jax.block_until_ready(cross_modal_nxtent(z_p, z_c2d))
    loss_masked = jax.block_until_ready(cross_modal_nxtent(z_p, z_c3d, mask))
    assert bool(jnp.isfinite(loss_nomask)) and bool(jnp.isfinite(loss_masked))
    assert jnp.allclose(loss_nomask, ref_nomask, rtol=5e-2, atol=5e-2), (
        loss_nomask, ref_nomask)
    assert jnp.allclose(loss_masked, ref_masked, rtol=5e-2, atol=5e-2), (
        loss_masked, ref_masked)

    print("KERNEL_OK")
</pallas_src>

<mosaic_0001>
module attributes {stable_mosaic.version = 11 : i64} {
  func.func @_nxtent_kernel(%arg0: i32, %arg1: memref<8x32xf32, #tpu.memory_space<vmem>>, %arg2: memref<8x32xf32, #tpu.memory_space<vmem>>, %arg3: memref<16x32xf32, #tpu.memory_space<vmem>>, %arg4: memref<8x128xf32, #tpu.memory_space<vmem>>) attributes {dimension_semantics = [#tpu.dimension_semantics<parallel>], iteration_bounds = array<i64: 1>, scalar_prefetch = 0 : i64, scratch_operands = 0 : i64, tpu.core_type = #tpu.core_type<tc>, window_params = [{transform_indices = @transform_0, window_bounds = array<i64: 8, 32>}, {transform_indices = @transform_1, window_bounds = array<i64: 8, 32>}, {pipeline_mode = #tpu.pipeline_mode<synchronous>, transform_indices = @transform_2, window_bounds = array<i64: 16, 32>}, {transform_indices = @transform_3, window_bounds = array<i64: 8, 128>}]} {
    %c0 = arith.constant 0 : index
    %c0_0 = arith.constant 0 : index
    %0 = vector.load %arg1[%c0, %c0_0] : memref<8x32xf32, #tpu.memory_space<vmem>>, vector<8x32xf32>
    %c0_1 = arith.constant 0 : index
    %c0_2 = arith.constant 0 : index
    %1 = vector.load %arg2[%c0_1, %c0_2] : memref<8x32xf32, #tpu.memory_space<vmem>>, vector<8x32xf32>
    %c0_3 = arith.constant 0 : index
    %c0_4 = arith.constant 0 : index
    %2 = vector.load %arg3[%c0_3, %c0_4] : memref<16x32xf32, #tpu.memory_space<vmem>>, vector<16x32xf32>
    %cst = arith.constant dense<0.000000e+00> : vector<8x16xf32>
    %3 = tpu.matmul %0, %2, %cst {dimension_numbers = #tpu.dot_dimension_numbers<[1], [1], [0], [0], [0, 0, 1, 0], [], []>} : vector<8x32xf32>, vector<16x32xf32>, vector<8x16xf32> -> vector<8x16xf32>
    %4 = math.exp %3 : vector<8x16xf32>
    %5 = arith.mulf %0, %0 : vector<8x32xf32>
    %cst_5 = arith.constant dense<0.000000e+00> : vector<8xf32>
    %6 = vector.multi_reduction <add>, %5, %cst_5 [1] : vector<8x32xf32> to vector<8xf32>
    %7 = vector.shape_cast %6 : vector<8xf32> to vector<8x1xf32>
    %8 = vector.extract_strided_slice %4 {offsets = [0, 0], sizes = [8, 8], strides = [1, 1]} : vector<8x16xf32> to vector<8x8xf32>
    %cst_6 = arith.constant dense<0.000000e+00> : vector<8xf32>
    %9 = vector.multi_reduction <add>, %8, %cst_6 [1] : vector<8x8xf32> to vector<8xf32>
    %10 = vector.shape_cast %9 : vector<8xf32> to vector<8x1xf32>
    %11 = math.exp %7 : vector<8x1xf32>
    %12 = arith.subf %10, %11 : vector<8x1xf32>
    %13 = vector.extract_strided_slice %4 {offsets = [0, 8], sizes = [8, 8], strides = [1, 1]} : vector<8x16xf32> to vector<8x8xf32>
    %cst_7 = arith.constant dense<0.000000e+00> : vector<8xf32>
    %14 = vector.multi_reduction <add>, %13, %cst_7 [1] : vector<8x8xf32> to vector<8xf32>
    %15 = vector.shape_cast %14 : vector<8xf32> to vector<8x1xf32>
    %16 = arith.mulf %0, %1 : vector<8x32xf32>
    %cst_8 = arith.constant dense<0.000000e+00> : vector<8xf32>
    %17 = vector.multi_reduction <add>, %16, %cst_8 [1] : vector<8x32xf32> to vector<8xf32>
    %18 = vector.shape_cast %17 : vector<8xf32> to vector<8x1xf32>
    %cst_9 = arith.constant 14.2857141 : f32
    %19 = vector.broadcast %cst_9 : f32 to vector<8x1xf32>
    %20 = arith.mulf %19, %18 : vector<8x1xf32>
    %21 = arith.addf %15, %12 : vector<8x1xf32>
    %22 = math.log %21 : vector<8x1xf32>
    %23 = arith.subf %22, %20 : vector<8x1xf32>
    %24 = vector.shape_cast %23 : vector<8x1xf32> to vector<8x1xf32>
    %25 = vector.broadcast %24 : vector<8x1xf32> to vector<8x128xf32>
    %c0_10 = arith.constant 0 : index
    %c0_11 = arith.constant 0 : index
    %26 = vector.load %arg4[%c0_10, %c0_11] : memref<8x128xf32, #tpu.memory_space<vmem>>, vector<8x128xf32>
    tpu.vector_store %arg4[%c0_10, %c0_11], %25 {strides = array<i32>} : memref<8x128xf32, #tpu.memory_space<vmem>>, vector<8x128xf32>,
    return
  }
  func.func @transform_0(%arg0: i32) -> (i32, i32) {
    %c0_i32 = arith.constant 0 : i32
    %c0_i32_0 = arith.constant 0 : i32
    return %arg0, %c0_i32 : i32, i32
  }
  func.func @transform_1(%arg0: i32) -> (i32, i32) {
    %c0_i32 = arith.constant 0 : i32
    %c0_i32_0 = arith.constant 0 : i32
    return %arg0, %c0_i32 : i32, i32
  }
  func.func @transform_2(%arg0: i32) -> (i32, i32) {
    %c0_i32 = arith.constant 0 : i32
    %c0_i32_0 = arith.constant 0 : i32
    %c0_i32_1 = arith.constant 0 : i32
    return %c0_i32, %c0_i32_0 : i32, i32
  }
  func.func @transform_3(%arg0: i32) -> (i32, i32) {
    %c0_i32 = arith.constant 0 : i32
    %c0_i32_0 = arith.constant 0 : i32
    return %arg0, %c0_i32 : i32, i32
  }
}

</mosaic_0001>

<llo_original>
// kernel: _cross_modal_nxtent_nomask.1
$region0: #{_cross_modal_nxtent_nomask.1}
  #allocation0 [shape = 'u32[]', space=smem, size = 0x4, offset = 0x4, fixed_abs, tag = 'smem constant byte address 0x4 - core index']
  #allocation1 [shape = 'u32[144,128]{1,0:T(1,128)}', space=vmem, size = 0x12000, scoped, tag = 'internal scratch']
  %s0 = inlined_call_operand.vmem [shape: f32[8,32], index: 0, kind: input, shape index: {}]
  %s1 = inlined_call_operand.vmem [shape: f32[8,32], index: 1, kind: input, shape index: {}]
  %s2 = inlined_call_operand.vmem [shape: f32[16,32], index: 2, kind: input, shape index: {}]
  %s3 = inlined_call_operand.vmem [shape: f32[8,128], index: 3, kind: output, shape index: {}]
  %s4 = sld [smem:[#allocation0]]
  $region22: #{_cross_modal_nxtent_nomask.1} parent=0
    _
  %s6 = ssub.s32 1, %s4
  %s7 = scalar_select 0, %s6, %s4
  // Predicated region
  $region2: #{_cross_modal_nxtent_nomask.1} parent=0 // pred_check
    _
  $region3: #{_cross_modal_nxtent_nomask.1} parent=0 // pred_check_branch
    %9 = sbr.rel (0) target = $region5
  $region4: #{_cross_modal_nxtent_nomask.1} parent=0 // pred_region
    _
  $region5: #{_cross_modal_nxtent_nomask.1} parent=0 // pred_fallthru
    _
  // Predicated region
  $region6: #{_cross_modal_nxtent_nomask.1} parent=0 // pred_check
    _
  $region7: #{_cross_modal_nxtent_nomask.1} parent=0 // pred_check_branch
    %11 = sbr.rel (0) target = $region9
  $region8: #{_cross_modal_nxtent_nomask.1} parent=0 // pred_region
    _
  $region9: #{_cross_modal_nxtent_nomask.1} parent=0 // pred_fallthru
    _
  // Predicated region
  $region10: #{_cross_modal_nxtent_nomask.1} parent=0 // pred_check
    _
  $region11: #{_cross_modal_nxtent_nomask.1} parent=0 // pred_check_branch
    %13 = sbr.rel (0) target = $region13
  $region12: #{_cross_modal_nxtent_nomask.1} parent=0 // pred_region
    _
  $region13: #{_cross_modal_nxtent_nomask.1} parent=0 // pred_fallthru
    _
  %v14 = vld [vmem:[%s0] sm:$0xff]
  %v15 = vld [vmem:[%s1] sm:$0xff]
  %v16 = vld [vmem:[%s2] sm:$0xff]
  %v17 = vld [vmem:[%s2 + $0x8] sm:$0xff]
  %vm18 = vcmask 261120
  %v20 = vsel %vm18, %v14, 0
  %v23 = vsel %vm18, %v16, 0
  %v26 = vsel %vm18, %v17, 0
  %28 = vmatprep.subr.mxu0 0.0
  %29 = vmatpush1.xpose.msra.mxu0 %v23
  %30 = vmatprep.subr.mxu0 0.0
  %31 = vmatpush1.xpose.msra.mxu0 %v26
  %32 = vmatprep.subr.mxu0 0.0
  %33 = vmatpush1.xpose.msra.mxu0 0.0
  %34 = vmatprep.subr.mxu0 0.0
  %35 = vmatpush1.xpose.msra.mxu0 0.0
  %36 = vmatprep.subr.mxu0 0.0
  %37 = vmatpush1.xpose.msra.mxu0 0.0
  %38 = vmatprep.subr.mxu0 0.0
  %39 = vmatpush1.xpose.msra.mxu0 0.0
  %40 = vmatprep.subr.mxu0 0.0
  %41 = vmatpush1.xpose.msra.mxu0 0.0
  %42 = vmatprep.subr.mxu0 0.0
  %43 = vmatpush1.xpose.msra.mxu0 0.0
  %44 = vmatprep.subr.mxu0 0.0
  %45 = vmatpush1.xpose.msra.mxu0 0.0
  %46 = vmatprep.subr.mxu0 0.0
  %47 = vmatpush1.xpose.msra.mxu0 0.0
  %48 = vmatprep.subr.mxu0 0.0
  %49 = vmatpush1.xpose.msra.mxu0 0.0
  %50 = vmatprep.subr.mxu0 0.0
  %51 = vmatpush1.xpose.msra.mxu0 0.0
  %52 = vmatprep.subr.mxu0 0.0
  %53 = vmatpush1.xpose.msra.mxu0 0.0
  %54 = vmatprep.subr.mxu0 0.0
  %55 = vmatpush1.xpose.msra.mxu0 0.0
  %56 = vmatprep.subr.mxu0 0.0
  %57 = vmatpush1.xpose.msra.mxu0 0.0
  %58 = vmatprep.subr.mxu0 0.0
  %59 = vmatpush1.xpose.msra.mxu0 0.0
  %60 = vmatprep.subr.mxu0 0.0
  %61 = vmatpush1.xpose.msra.mxu0 0.0
  %62 = vmatprep.subr.mxu0 0.0
  %63 = vmatpush1.xpose.msra.mxu0 0.0
  %64 = vmatprep.subr.mxu0 0.0
  %65 = vmatpush1.xpose.msra.mxu0 0.0
  %66 = vmatprep.subr.mxu0 0.0
  %67 = vmatpush1.xpose.msra.mxu0 0.0
  %68 = vmatprep.subr.mxu0 0.0
  %69 = vmatpush1.xpose.msra.mxu0 0.0
  %70 = vmatprep.subr.mxu0 0.0
  %71 = vmatpush1.xpose.msra.mxu0 0.0
  %72 = vmatprep.subr.mxu0 0.0
  %73 = vmatpush1.xpose.msra.mxu0 0.0
  %74 = vmatprep.subr.mxu0 0.0
  %75 = vmatpush1.xpose.msra.mxu0 0.0
  %76 = vmatprep.subr.mxu0 0.0
  %77 = vmatpush1.xpose.msra.mxu0 0.0
  %78 = vmatprep.subr.mxu0 0.0
  %79 = vmatpush1.xpose.msra.mxu0 0.0
  %80 = vmatprep.subr.mxu0 0.0
  %81 = vmatpush1.xpose.msra.mxu0 0.0
  %82 = vmatprep.subr.mxu0 0.0
  %83 = vmatpush1.xpose.msra.mxu0 0.0
  %84 = vmatprep.subr.mxu0 0.0
  %85 = vmatpush1.xpose.msra.mxu0 0.0
  %86 = vmatprep.subr.mxu0 0.0
  %87 = vmatpush1.xpose.msra.mxu0 0.0
  %88 = vmatprep.subr.mxu0 0.0
  %89 = vmatpush1.xpose.msra.mxu0 0.0
  %90 = vmatprep.subr.mxu0 0.0
  %91 = vmatpush1.xpose.msra.mxu0 0.0
  %92 = vmatprep.mubr.f32.mxu0 0.0
  %93 = vmatmul.mubr.f32.gmra.mrb[0].mxu0 %v20
  %v94 = vpop.f32.mrb[0].mxu0
  %v95 = vadd.f32 0.0, %v94
  %v96 = vpop.f32.mrb[0].mxu0
  %97 = vdwg.mxu0
  %v98 = vmul.f32 %v95, 1.442695
  %v99 = vpow.pop %v98
  %v100 = vmul.f32 %v14, %v14
  %v101 = vsel %vm18, %v100, 0.0
  %102 = vadd.xlane.f32.xlu0 %v101
  %v103 = vpop.xlane.xlu0 %102
  %vm104 = vcmask 64512
  %v105 = vsel %vm104, %v99, 0.0
  %106 = vadd.xlane.f32.xlu0 %v105
  %v107 = vpop.xlane.xlu0 %106
  %v108 = vmul.f32 %v103, 1.442695
  %v109 = vpow.pop %v108
  %v110 = vsub.f32 %v107, %v109
  %112 = vrot.lane.b32.xlu0 %v99, 120
  %v113 = vpop.permute.xlu0 %112
  %v115 = vsel %vm104, %v113, 0.0
  %116 = vadd.xlane.f32.xlu0 %v115
  %v117 = vpop.xlane.xlu0 %116
  %v118 = vmul.f32 %v14, %v15
  %v119 = vsel %vm18, %v118, 0.0
  %120 = vadd.xlane.f32.xlu0 %v119
  %v121 = vpop.xlane.xlu0 %120
  %v122 = vmul.f32 %v121, 14.285714
  %v123 = vadd.f32 %v117, %v110
  %v124 = vlog2.pop %v123
  %v125 = vmul.f32 %v124, 0.6931472
  %v126 = vsub.f32 %v125, %v122
  %127 = vst [vmem:[%s3] sm:$0xff] %v126
  // Predicated region
  $region14: #{_cross_modal_nxtent_nomask.1} parent=0 // pred_check
    _
  $region15: #{_cross_modal_nxtent_nomask.1} parent=0 // pred_check_branch
    %129 = sbr.rel (0) target = $region17
  $region16: #{_cross_modal_nxtent_nomask.1} parent=0 // pred_region
    _
  $region17: #{_cross_modal_nxtent_nomask.1} parent=0 // pred_fallthru
    _
  // Predicated region
  $region18: #{_cross_modal_nxtent_nomask.1} parent=0 // pred_check
    _
  $region19: #{_cross_modal_nxtent_nomask.1} parent=0 // pred_check_branch
    %131 = sbr.rel (0) target = $region21
  $region20: #{_cross_modal_nxtent_nomask.1} parent=0 // pred_region
    _
  $region21: #{_cross_modal_nxtent_nomask.1} parent=0 // pred_fallthru
    _

</llo_original>
